<compile_context>
chip_gen: v5e
topology: v5e:2x2
jax: 0.10.0
libtpu: 0.0.40
codegen_flags: <defaults>
</compile_context>

<pallas_src>
import math

import jax
import jax.numpy as jnp
from jax.experimental import pallas as pl
from jax.experimental.pallas import tpu as pltpu

LANE = 128      # vreg lane width (last dim)
SUBLANE = 8     # vreg sublane count (second-to-last dim, f32)


def _cdiv(a, b):
    return (a + b - 1) // b


def _round_up(x, m):
    return _cdiv(x, m) * m


def _pad2d(a, rows, cols, dtype=None):
    r, c = a.shape
    out = jnp.pad(a, ((0, rows - r), (0, cols - c)))
    return out if dtype is None else out.astype(dtype)


def actor_kernel(x_ref, w1_ref, b1_ref, w2_ref, b2_ref, w3_ref, b3_ref, o_ref):
    # Cast the streamed x tile to the matmul dtype in-kernel (VPU), keep f32 accumulation.
    x = x_ref[...].astype(w1_ref.dtype)
    # fc1 + ReLU
    h1 = jnp.dot(x, w1_ref[...], preferred_element_type=jnp.float32)
    h1 = jnp.maximum(h1 + b1_ref[...], 0.0)
    # fc2 + ReLU
    h2 = jnp.dot(h1.astype(w2_ref.dtype), w2_ref[...],
                 preferred_element_type=jnp.float32)
    h2 = jnp.maximum(h2 + b2_ref[...], 0.0)
    # output_layer + Tanh (tanh -> EUP)
    out = jnp.dot(h2.astype(w3_ref.dtype), w3_ref[...],
                  preferred_element_type=jnp.float32)
    o_ref[...] = jnp.tanh(out + b3_ref[...]).astype(o_ref.dtype)


def actor_forward(x, params, *, block_b=512, matmul_dtype=jnp.bfloat16,
                  vmem_budget_bytes=44 * 2**20, single_buffer_weights=True):
    """x: [B, input_dim].  params: dict of (in,out) weights & (1,out) biases (f32)."""
    w1, b1 = params["w1"], params["b1"]
    w2, b2 = params["w2"], params["b2"]
    w3, b3 = params["w3"], params["b3"]

    B, Din = x.shape
    H = w1.shape[1]
    A = w3.shape[1]

    # Lane-pad hidden / action dims (cheap, batch-independent). Din stays unpadded:
    # a full-extent block dim is exempt from the 128 rule, and x is streamed as-is.
    Hp = _round_up(H, LANE)
    Ap = _round_up(A, LANE)

    mm_sz = jnp.dtype(matmul_dtype).itemsize
    x_sz = jnp.dtype(x.dtype).itemsize

    # --- batch tile: >=4 tiles at large B (>=2 per v7x TensorCore), shrink to fit VMEM ---
    tb = min(block_b, max(SUBLANE, _round_up(_cdiv(B, 4), SUBLANE)))
    tb = min(tb, _round_up(B, SUBLANE))

    # Conservative (double-buffered-weight) footprint estimate; single-buffering only adds headroom.
    fixed_bytes = 2 * mm_sz * (Din * Hp + Hp * Hp + Hp * Ap) + 2 * 4 * (2 * Hp + Ap)

    def _act_bytes(t):
        return (2 * t * Din * x_sz          # double-buffered x tiles
                + 2 * t * Ap * 4            # double-buffered out tiles
                + 3 * t * Hp * 4            # f32 intermediates h1/h2 (+slack)
                + 2 * t * Hp * mm_sz)       # bf16 casts of intermediates

    while tb > SUBLANE and fixed_bytes + _act_bytes(tb) > vmem_budget_bytes:
        tb = max(SUBLANE, _round_up(tb // 2, SUBLANE))

    vmem_limit = int(min(max(1.25 * (fixed_bytes + _act_bytes(tb)), 16 * 2**20),
                         96 * 2**20))

    # Pad/cast weights once (small); biases stay f32.
    w1p = _pad2d(w1, Din, Hp, matmul_dtype)
    w2p = _pad2d(w2, Hp, Hp, matmul_dtype)
    w3p = _pad2d(w3, Hp, Ap, matmul_dtype)
    b1p = _pad2d(b1, 1, Hp, jnp.float32)
    b2p = _pad2d(b2, 1, Hp, jnp.float32)
    b3p = _pad2d(b3, 1, Ap, jnp.float32)

    grid = (_cdiv(B, tb),)

    flops = 2 * B * (Din * Hp + Hp * Hp + Hp * Ap)
    bytes_accessed = (B * Din * x_sz
                      + mm_sz * (Din * Hp + Hp * Hp + Hp * Ap)
                      + 4 * (2 * Hp + Ap)
                      + 4 * B * Ap)

    def run(single_buffer):
        def resident(shape):
            # Constant block index -> DMA'd once, stays resident in VMEM.
            if single_buffer:
                return pl.BlockSpec(shape, lambda i: (0, 0),
                                    pipeline_mode=pl.Buffered(1))
            return pl.BlockSpec(shape, lambda i: (0, 0))

        return pl.pallas_call(
            actor_kernel,
            out_shape=jax.ShapeDtypeStruct((B, Ap), jnp.float32),
            grid=grid,
            in_specs=[
                pl.BlockSpec((tb, Din), lambda i: (i, 0)),   # x batch tile (pipelined)
                resident((Din, Hp)),                         # w1
                resident((1, Hp)),                           # b1
                resident((Hp, Hp)),                          # w2
                resident((1, Hp)),                           # b2
                resident((Hp, Ap)),                          # w3
                resident((1, Ap)),                           # b3
            ],
            out_specs=pl.BlockSpec((tb, Ap), lambda i: (i, 0)),
            compiler_params=pltpu.CompilerParams(
                dimension_semantics=("parallel",),           # shard batch tiles across TCs on v7x
                vmem_limit_bytes=vmem_limit,
            ),
            cost_estimate=pl.CostEstimate(
                flops=flops,
                transcendentals=B * Ap,
                bytes_accessed=bytes_accessed,
            ),
        )(x, w1p, b1p, w2p, b2p, w3p, b3p)

    if single_buffer_weights and hasattr(pl, "Buffered"):
        try:
            out_padded = run(True)
        except Exception:
            # Fall back to default double-buffering if Buffered(1) is rejected.
            out_padded = run(False)
    else:
        out_padded = run(False)

    return out_padded[:, :A]


def xavier_uniform(key, fan_in, fan_out):
    # Matches torch.nn.init.xavier_uniform_ (gain=1): U(-a, a), a = sqrt(6/(fan_in+fan_out)).
    a = math.sqrt(6.0 / (fan_in + fan_out))
    # PyTorch weight shape is (out, in); sample in that shape then transpose to (in, out).
    w = jax.random.uniform(key, (fan_out, fan_in), jnp.float32, minval=-a, maxval=a)
    return w.T


def init_params(key, input_dim, action_dim, hidden_dim):
    k1, k2, k3 = jax.random.split(key, 3)
    return {
        "w1": xavier_uniform(k1, input_dim, hidden_dim),
        "b1": jnp.zeros((1, hidden_dim), jnp.float32),
        "w2": xavier_uniform(k2, hidden_dim, hidden_dim),
        "b2": jnp.zeros((1, hidden_dim), jnp.float32),
        "w3": xavier_uniform(k3, hidden_dim, action_dim),
        "b3": jnp.zeros((1, action_dim), jnp.float32),
    }


def actor_forward_ref(x, params):
    h1 = jnp.maximum(x @ params["w1"] + params["b1"], 0.0)
    h2 = jnp.maximum(h1 @ params["w2"] + params["b2"], 0.0)
    return jnp.tanh(h2 @ params["w3"] + params["b3"])


if __name__ == "__main__":
    key = jax.random.PRNGKey(0)
    kx, kp = jax.random.split(key)

    batch, input_dim, hidden_dim, action_dim = 8, 16, 32, 4
    x = jax.random.normal(kx, (batch, input_dim), jnp.float32)
    params = init_params(kp, input_dim, action_dim, hidden_dim)

    ref = jax.block_until_ready(actor_forward_ref(x, params))

    # f32 matmul path: bit-tight check against the pure-JAX reference.
    out_f32 = jax.block_until_ready(
        actor_forward(x, params, matmul_dtype=jnp.float32))
    assert out_f32.shape == (batch, action_dim)
    assert jnp.allclose(out_f32, ref, atol=1e-5, rtol=1e-5), "f32 path mismatch"

    # Default (bf16 MXU inputs, f32 accumulation): looser tolerance.
    out_bf16 = jax.block_until_ready(actor_forward(x, params))
    assert out_bf16.shape == (batch, action_dim)
    assert jnp.allclose(out_bf16, ref, atol=3e-2, rtol=3e-2), "bf16 path mismatch"

    print("KERNEL_OK")
</pallas_src>

<mosaic_0001>
module attributes {stable_mosaic.version = 11 : i64} {
  func.func @actor_kernel(%arg0: i32, %arg1: memref<8x16xf32, #tpu.memory_space<vmem>>, %arg2: memref<16x128xf32, #tpu.memory_space<vmem>>, %arg3: memref<1x128xf32, #tpu.memory_space<vmem>>, %arg4: memref<128x128xf32, #tpu.memory_space<vmem>>, %arg5: memref<1x128xf32, #tpu.memory_space<vmem>>, %arg6: memref<128x128xf32, #tpu.memory_space<vmem>>, %arg7: memref<1x128xf32, #tpu.memory_space<vmem>>, %arg8: memref<8x128xf32, #tpu.memory_space<vmem>>) attributes {dimension_semantics = [#tpu.dimension_semantics<parallel>], iteration_bounds = array<i64: 1>, scalar_prefetch = 0 : i64, scratch_operands = 0 : i64, tpu.core_type = #tpu.core_type<tc>, window_params = [{transform_indices = @transform_0, window_bounds = array<i64: 8, 16>}, {pipeline_mode = #tpu.pipeline_mode<synchronous>, transform_indices = @transform_1, window_bounds = array<i64: 16, 128>}, {pipeline_mode = #tpu.pipeline_mode<synchronous>, transform_indices = @transform_2, window_bounds = array<i64: 1, 128>}, {pipeline_mode = #tpu.pipeline_mode<synchronous>, transform_indices = @transform_3, window_bounds = array<i64: 128, 128>}, {pipeline_mode = #tpu.pipeline_mode<synchronous>, transform_indices = @transform_4, window_bounds = array<i64: 1, 128>}, {pipeline_mode = #tpu.pipeline_mode<synchronous>, transform_indices = @transform_5, window_bounds = array<i64: 128, 128>}, {pipeline_mode = #tpu.pipeline_mode<synchronous>, transform_indices = @transform_6, window_bounds = array<i64: 1, 128>}, {transform_indices = @transform_7, window_bounds = array<i64: 8, 128>}]} {
    %c0 = arith.constant 0 : index
    %c0_0 = arith.constant 0 : index
    %0 = vector.load %arg1[%c0, %c0_0] : memref<8x16xf32, #tpu.memory_space<vmem>>, vector<8x16xf32>
    %c0_1 = arith.constant 0 : index
    %c0_2 = arith.constant 0 : index
    %1 = vector.load %arg2[%c0_1, %c0_2] : memref<16x128xf32, #tpu.memory_space<vmem>>, vector<16x128xf32>
    %cst = arith.constant dense<0.000000e+00> : vector<8x128xf32>
    %2 = tpu.matmul %0, %1, %cst {dimension_numbers = #tpu.dot_dimension_numbers<[1], [0], [0], [1], [0, 0, 1, 1], [], []>} : vector<8x16xf32>, vector<16x128xf32>, vector<8x128xf32> -> vector<8x128xf32>
    %c0_3 = arith.constant 0 : index
    %c0_4 = arith.constant 0 : index
    %3 = vector.load %arg3[%c0_3, %c0_4] : memref<1x128xf32, #tpu.memory_space<vmem>>, vector<1x128xf32>
    %4 = vector.broadcast %3 : vector<1x128xf32> to vector<8x128xf32>
    %5 = arith.addf %2, %4 : vector<8x128xf32>
    %cst_5 = arith.constant 0.000000e+00 : f32
    %6 = vector.broadcast %cst_5 : f32 to vector<8x128xf32>
    %7 = arith.maximumf %5, %6 : vector<8x128xf32>
    %c0_6 = arith.constant 0 : index
    %c0_7 = arith.constant 0 : index
    %8 = vector.load %arg4[%c0_6, %c0_7] : memref<128x128xf32, #tpu.memory_space<vmem>>, vector<128x128xf32>
    %cst_8 = arith.constant dense<0.000000e+00> : vector<8x128xf32>
    %9 = tpu.matmul %7, %8, %cst_8 {dimension_numbers = #tpu.dot_dimension_numbers<[1], [0], [0], [1], [0, 0, 1, 1], [], []>} : vector<8x128xf32>, vector<128x128xf32>, vector<8x128xf32> -> vector<8x128xf32>
    %c0_9 = arith.constant 0 : index
    %c0_10 = arith.constant 0 : index
    %10 = vector.load %arg5[%c0_9, %c0_10] : memref<1x128xf32, #tpu.memory_space<vmem>>, vector<1x128xf32>
    %11 = vector.broadcast %10 : vector<1x128xf32> to vector<8x128xf32>
    %12 = arith.addf %9, %11 : vector<8x128xf32>
    %cst_11 = arith.constant 0.000000e+00 : f32
    %13 = vector.broadcast %cst_11 : f32 to vector<8x128xf32>
    %14 = arith.maximumf %12, %13 : vector<8x128xf32>
    %c0_12 = arith.constant 0 : index
    %c0_13 = arith.constant 0 : index
    %15 = vector.load %arg6[%c0_12, %c0_13] : memref<128x128xf32, #tpu.memory_space<vmem>>, vector<128x128xf32>
    %cst_14 = arith.constant dense<0.000000e+00> : vector<8x128xf32>
    %16 = tpu.matmul %14, %15, %cst_14 {dimension_numbers = #tpu.dot_dimension_numbers<[1], [0], [0], [1], [0, 0, 1, 1], [], []>} : vector<8x128xf32>, vector<128x128xf32>, vector<8x128xf32> -> vector<8x128xf32>
    %c0_15 = arith.constant 0 : index
    %c0_16 = arith.constant 0 : index
    %17 = vector.load %arg7[%c0_15, %c0_16] : memref<1x128xf32, #tpu.memory_space<vmem>>, vector<1x128xf32>
    %18 = vector.broadcast %17 : vector<1x128xf32> to vector<8x128xf32>
    %19 = arith.addf %16, %18 : vector<8x128xf32>
    %20 = math.tanh %19 : vector<8x128xf32>
    %c0_17 = arith.constant 0 : index
    %c0_18 = arith.constant 0 : index
    %21 = vector.load %arg8[%c0_17, %c0_18] : memref<8x128xf32, #tpu.memory_space<vmem>>, vector<8x128xf32>
    tpu.vector_store %arg8[%c0_17, %c0_18], %20 {strides = array<i32>} : memref<8x128xf32, #tpu.memory_space<vmem>>, vector<8x128xf32>,
    return
  }
  func.func @transform_0(%arg0: i32) -> (i32, i32) {
    %c0_i32 = arith.constant 0 : i32
    %c0_i32_0 = arith.constant 0 : i32
    return %arg0, %c0_i32 : i32, i32
  }
  func.func @transform_1(%arg0: i32) -> (i32, i32) {
    %c0_i32 = arith.constant 0 : i32
    %c0_i32_0 = arith.constant 0 : i32
    %c0_i32_1 = arith.constant 0 : i32
    return %c0_i32, %c0_i32_0 : i32, i32
  }
  func.func @transform_2(%arg0: i32) -> (i32, i32) {
    %c0_i32 = arith.constant 0 : i32
    %c0_i32_0 = arith.constant 0 : i32
    %c0_i32_1 = arith.constant 0 : i32
    return %c0_i32, %c0_i32_0 : i32, i32
  }
  func.func @transform_3(%arg0: i32) -> (i32, i32) {
    %c0_i32 = arith.constant 0 : i32
    %c0_i32_0 = arith.constant 0 : i32
    %c0_i32_1 = arith.constant 0 : i32
    return %c0_i32, %c0_i32_0 : i32, i32
  }
  func.func @transform_4(%arg0: i32) -> (i32, i32) {
    %c0_i32 = arith.constant 0 : i32
    %c0_i32_0 = arith.constant 0 : i32
    %c0_i32_1 = arith.constant 0 : i32
    return %c0_i32, %c0_i32_0 : i32, i32
  }
  func.func @transform_5(%arg0: i32) -> (i32, i32) {
    %c0_i32 = arith.constant 0 : i32
    %c0_i32_0 = arith.constant 0 : i32
    %c0_i32_1 = arith.constant 0 : i32
    return %c0_i32, %c0_i32_0 : i32, i32
  }
  func.func @transform_6(%arg0: i32) -> (i32, i32) {
    %c0_i32 = arith.constant 0 : i32
    %c0_i32_0 = arith.constant 0 : i32
    %c0_i32_1 = arith.constant 0 : i32
    return %c0_i32, %c0_i32_0 : i32, i32
  }
  func.func @transform_7(%arg0: i32) -> (i32, i32) {
    %c0_i32 = arith.constant 0 : i32
    %c0_i32_0 = arith.constant 0 : i32
    return %arg0, %c0_i32 : i32, i32
  }
}

module attributes {stable_mosaic.version = 11 : i64} {
  func.func @actor_kernel(%arg0: i32, %arg1: memref<8x16xf32, #tpu.memory_space<vmem>>, %arg2: memref<16x128xf32, #tpu.memory_space<vmem>>, %arg3: memref<1x128xf32, #tpu.memory_space<vmem>>, %arg4: memref<128x128xf32, #tpu.memory_space<vmem>>, %arg5: memref<1x128xf32, #tpu.memory_space<vmem>>, %arg6: memref<128x128xf32, #tpu.memory_space<vmem>>, %arg7: memref<1x128xf32, #tpu.memory_space<vmem>>, %arg8: memref<8x128xf32, #tpu.memory_space<vmem>>) attributes {dimension_semantics = [#tpu.dimension_semantics<parallel>], iteration_bounds = array<i64: 1>, scalar_prefetch = 0 : i64, scratch_operands = 0 : i64, tpu.core_type = #tpu.core_type<tc>, window_params = [{transform_indices = @transform_0, window_bounds = array<i64: 8, 16>}, {pipeline_mode = #tpu.pipeline_mode<synchronous>, transform_indices = @transform_1, window_bounds = array<i64: 16, 128>}, {pipeline_mode = #tpu.pipeline_mode<synchronous>, transform_indices = @transform_2, window_bounds = array<i64: 1, 128>}, {pipeline_mode = #tpu.pipeline_mode<synchronous>, transform_indices = @transform_3, window_bounds = array<i64: 128, 128>}, {pipeline_mode = #tpu.pipeline_mode<synchronous>, transform_indices = @transform_4, window_bounds = array<i64: 1, 128>}, {pipeline_mode = #tpu.pipeline_mode<synchronous>, transform_indices = @transform_5, window_bounds = array<i64: 128, 128>}, {pipeline_mode = #tpu.pipeline_mode<synchronous>, transform_indices = @transform_6, window_bounds = array<i64: 1, 128>}, {transform_indices = @transform_7, window_bounds = array<i64: 8, 128>}]} {
    %c0 = arith.constant 0 : index
    %c0_0 = arith.constant 0 : index
    %0 = vector.load %arg1[%c0, %c0_0] : memref<8x16xf32, #tpu.memory_space<vmem>>, vector<8x16xf32>
    %c0_1 = arith.constant 0 : index
    %c0_2 = arith.constant 0 : index
    %1 = vector.load %arg2[%c0_1, %c0_2] : memref<16x128xf32, #tpu.memory_space<vmem>>, vector<16x128xf32>
    %cst = arith.constant dense<0.000000e+00> : vector<8x128xf32>
    %2 = tpu.matmul %0, %1, %cst {dimension_numbers = #tpu.dot_dimension_numbers<[1], [0], [0], [1], [0, 0, 1, 1], [], []>} : vector<8x16xf32>, vector<16x128xf32>, vector<8x128xf32> -> vector<8x128xf32>
    %c0_3 = arith.constant 0 : index
    %c0_4 = arith.constant 0 : index
    %3 = vector.load %arg3[%c0_3, %c0_4] : memref<1x128xf32, #tpu.memory_space<vmem>>, vector<1x128xf32>
    %4 = vector.broadcast %3 : vector<1x128xf32> to vector<8x128xf32>
    %5 = arith.addf %2, %4 : vector<8x128xf32>
    %cst_5 = arith.constant 0.000000e+00 : f32
    %6 = vector.broadcast %cst_5 : f32 to vector<8x128xf32>
    %7 = arith.maximumf %5, %6 : vector<8x128xf32>
    %c0_6 = arith.constant 0 : index
    %c0_7 = arith.constant 0 : index
    %8 = vector.load %arg4[%c0_6, %c0_7] : memref<128x128xf32, #tpu.memory_space<vmem>>, vector<128x128xf32>
    %cst_8 = arith.constant dense<0.000000e+00> : vector<8x128xf32>
    %9 = tpu.matmul %7, %8, %cst_8 {dimension_numbers = #tpu.dot_dimension_numbers<[1], [0], [0], [1], [0, 0, 1, 1], [], []>} : vector<8x128xf32>, vector<128x128xf32>, vector<8x128xf32> -> vector<8x128xf32>
    %c0_9 = arith.constant 0 : index
    %c0_10 = arith.constant 0 : index
    %10 = vector.load %arg5[%c0_9, %c0_10] : memref<1x128xf32, #tpu.memory_space<vmem>>, vector<1x128xf32>
    %11 = vector.broadcast %10 : vector<1x128xf32> to vector<8x128xf32>
    %12 = arith.addf %9, %11 : vector<8x128xf32>
    %cst_11 = arith.constant 0.000000e+00 : f32
    %13 = vector.broadcast %cst_11 : f32 to vector<8x128xf32>
    %14 = arith.maximumf %12, %13 : vector<8x128xf32>
    %c0_12 = arith.constant 0 : index
    %c0_13 = arith.constant 0 : index
    %15 = vector.load %arg6[%c0_12, %c0_13] : memref<128x128xf32, #tpu.memory_space<vmem>>, vector<128x128xf32>
    %cst_14 = arith.constant dense<0.000000e+00> : vector<8x128xf32>
    %16 = tpu.matmul %14, %15, %cst_14 {dimension_numbers = #tpu.dot_dimension_numbers<[1], [0], [0], [1], [0, 0, 1, 1], [], []>} : vector<8x128xf32>, vector<128x128xf32>, vector<8x128xf32> -> vector<8x128xf32>
    %c0_15 = arith.constant 0 : index
    %c0_16 = arith.constant 0 : index
    %17 = vector.load %arg7[%c0_15, %c0_16] : memref<1x128xf32, #tpu.memory_space<vmem>>, vector<1x128xf32>
    %18 = vector.broadcast %17 : vector<1x128xf32> to vector<8x128xf32>
    %19 = arith.addf %16, %18 : vector<8x128xf32>
    %20 = math.tanh %19 : vector<8x128xf32>
    %c0_17 = arith.constant 0 : index
    %c0_18 = arith.constant 0 : index
    %21 = vector.load %arg8[%c0_17, %c0_18] : memref<8x128xf32, #tpu.memory_space<vmem>>, vector<8x128xf32>
    tpu.vector_store %arg8[%c0_17, %c0_18], %20 {strides = array<i32>} : memref<8x128xf32, #tpu.memory_space<vmem>>, vector<8x128xf32>,
    return
  }
  func.func @transform_0(%arg0: i32) -> (i32, i32) {
    %c0_i32 = arith.constant 0 : i32
    %c0_i32_0 = arith.constant 0 : i32
    return %arg0, %c0_i32 : i32, i32
  }
  func.func @transform_1(%arg0: i32) -> (i32, i32) {
    %c0_i32 = arith.constant 0 : i32
    %c0_i32_0 = arith.constant 0 : i32
    %c0_i32_1 = arith.constant 0 : i32
    return %c0_i32, %c0_i32_0 : i32, i32
  }
  func.func @transform_2(%arg0: i32) -> (i32, i32) {
    %c0_i32 = arith.constant 0 : i32
    %c0_i32_0 = arith.constant 0 : i32
    %c0_i32_1 = arith.constant 0 : i32
    return %c0_i32, %c0_i32_0 : i32, i32
  }
  func.func @transform_3(%arg0: i32) -> (i32, i32) {
    %c0_i32 = arith.constant 0 : i32
    %c0_i32_0 = arith.constant 0 : i32
    %c0_i32_1 = arith.constant 0 : i32
    return %c0_i32, %c0_i32_0 : i32, i32
  }
  func.func @transform_4(%arg0: i32) -> (i32, i32) {
    %c0_i32 = arith.constant 0 : i32
    %c0_i32_0 = arith.constant 0 : i32
    %c0_i32_1 = arith.constant 0 : i32
    return %c0_i32, %c0_i32_0 : i32, i32
  }
  func.func @transform_5(%arg0: i32) -> (i32, i32) {
    %c0_i32 = arith.constant 0 : i32
    %c0_i32_0 = arith.constant 0 : i32
    %c0_i32_1 = arith.constant 0 : i32
    return %c0_i32, %c0_i32_0 : i32, i32
  }
  func.func @transform_6(%arg0: i32) -> (i32, i32) {
    %c0_i32 = arith.constant 0 : i32
    %c0_i32_0 = arith.constant 0 : i32
    %c0_i32_1 = arith.constant 0 : i32
    return %c0_i32, %c0_i32_0 : i32, i32
  }
  func.func @transform_7(%arg0: i32) -> (i32, i32) {
    %c0_i32 = arith.constant 0 : i32
    %c0_i32_0 = arith.constant 0 : i32
    return %arg0, %c0_i32 : i32, i32
  }
}

</mosaic_0001>

<llo_original>
// kernel: tpu_custom_call.1
$region0: #{tpu_custom_call.1}
  #allocation0 [shape = 'u32[]', space=smem, size = 0x4, offset = 0x4, fixed_abs, tag = 'smem constant byte address 0x4 - core index']
  #allocation1 [shape = 'u32[72,128]{1,0:T(1,128)}', space=vmem, size = 0x9000, scoped, tag = 'internal scratch']
  %s0 = inlined_call_operand.hbm [shape: f32[8,16], index: 0, kind: input, shape index: {}]
  %s1 = inlined_call_operand.hbm [shape: f32[16,128], index: 1, kind: input, shape index: {}]
  %s2 = inlined_call_operand.vmem [shape: f32[1,128], index: 2, kind: input, shape index: {}]
  %s3 = inlined_call_operand.hbm [shape: f32[128,128], index: 3, kind: input, shape index: {}]
  %s4 = inlined_call_operand.vmem [shape: f32[1,128], index: 4, kind: input, shape index: {}]
  %s5 = inlined_call_operand.hbm [shape: f32[128,128], index: 5, kind: input, shape index: {}]
  %s6 = inlined_call_operand.vmem [shape: f32[1,128], index: 6, kind: input, shape index: {}]
  %s7 = inlined_call_operand.hbm [shape: f32[8,128], index: 7, kind: output, shape index: {}]
  %s8 = sld [smem:[#allocation0]]
  $region54: #{tpu_custom_call.1} parent=0
    _
  %s10 = ssub.s32 1, %s8
  %s11 = scalar_select 0, %s10, %s8
  $region1: #{tpu_custom_call.1} parent=0
    #allocation2 [shape = 'u8[4096]{0}', space=vmem, size = 0x1000, scoped, tag = 'input window, operand 0, single buffered']
    #allocation3 [shape = 's32[1]{0}', space=sflag, size = 0x4, scoped, tag = 'scoped memory for tpu_custom_call.1']
    #allocation4 [shape = 's32[1]{0}', space=sflag, size = 0x4, scoped, tag = 'scoped memory for tpu_custom_call.1']
    #allocation5 [shape = 'u8[8192]{0}', space=vmem, size = 0x2000, scoped, tag = 'input window, operand 1, single buffered']
    #allocation6 [shape = 's32[1]{0}', space=sflag, size = 0x4, scoped, tag = 'scoped memory for tpu_custom_call.1']
    #allocation7 [shape = 'u8[65536]{0}', space=vmem, size = 0x10000, scoped, tag = 'input window, operand 3, single buffered']
    #allocation8 [shape = 'u8[65536]{0}', space=vmem, size = 0x10000, scoped, tag = 'input window, operand 5, single buffered']
    #allocation9 [shape = 's32[1]{0}', space=sflag, size = 0x4, scoped, tag = 'scoped memory for tpu_custom_call.1']
    #allocation10 [shape = 'u8[4096]{0}', space=vmem, size = 0x1000, scoped, tag = 'output window, operand 0, single buffered']
    %12 = vsyncpa [#allocation3], 0
    %13 = vsyncpa [#allocation6], 0
    %14 = vsyncpa [#allocation9], 0
    %15 = vsyncpa [#allocation4], 0
    // Predicated region
    $region2: #{tpu_custom_call.1} parent=1 // pred_check
      _
    $region3: #{tpu_custom_call.1} parent=1 // pred_check_branch
      %17 = sbr.rel (0) target = $region5
    $region4: #{tpu_custom_call.1} parent=1 // pred_region
      %19 = vsyncadd [#allocation3], 0
      %s21 = sshll.u32 %s0, 4
      %s22 = int_to_ptr.hbm [resolvable:$true] %s21
      %s23 = sshll.u32 [#allocation2], 4
      %s24 = int_to_ptr.vmem [resolvable:$true] %s23
      %26 = dma.hbm_to_vmem [thread:$0]  %s22, 128, %s24, [#allocation3]
    $region5: #{tpu_custom_call.1} parent=1 // pred_fallthru
      _
    // Predicated region
    $region6: #{tpu_custom_call.1} parent=1 // pred_check
      _
    $region7: #{tpu_custom_call.1} parent=1 // pred_check_branch
      %28 = sbr.rel (0) target = $region9
    $region8: #{tpu_custom_call.1} parent=1 // pred_region
      %30 = vsyncadd [#allocation6], 0
      %s31 = sshll.u32 %s1, 4
      %s32 = int_to_ptr.hbm [resolvable:$true] %s31
      %s33 = sshll.u32 [#allocation5], 4
      %s34 = int_to_ptr.vmem [resolvable:$true] %s33
      %39 = dma.hbm_to_vmem [thread:$0]  %s32, 256, %s34, [#allocation6], 128, 128, 8
    $region9: #{tpu_custom_call.1} parent=1 // pred_fallthru
      _
    // Predicated region
    $region10: #{tpu_custom_call.1} parent=1 // pred_check
      _
    $region11: #{tpu_custom_call.1} parent=1 // pred_check_branch
      %41 = sbr.rel (0) target = $region13
    $region12: #{tpu_custom_call.1} parent=1 // pred_region
      _
    $region13: #{tpu_custom_call.1} parent=1 // pred_fallthru
      _
    // Predicated region
    $region14: #{tpu_custom_call.1} parent=1 // pred_check
      _
    $region15: #{tpu_custom_call.1} parent=1 // pred_check_branch
      %43 = sbr.rel (0) target = $region17
    $region16: #{tpu_custom_call.1} parent=1 // pred_region
      %45 = vsyncadd [#allocation6], 0
      %s46 = sshll.u32 %s3, 4
      %s47 = int_to_ptr.hbm [resolvable:$true] %s46
      %s48 = sshll.u32 [#allocation7], 4
      %s49 = int_to_ptr.vmem [resolvable:$true] %s48
      %54 = dma.hbm_to_vmem [thread:$0]  %s47, 2048, %s49, [#allocation6], 128, 128, 8
    $region17: #{tpu_custom_call.1} parent=1 // pred_fallthru
      _
    // Predicated region
    $region18: #{tpu_custom_call.1} parent=1 // pred_check
      _
    $region19: #{tpu_custom_call.1} parent=1 // pred_check_branch
      %56 = sbr.rel (0) target = $region21
    $region20: #{tpu_custom_call.1} parent=1 // pred_region
      _
    $region21: #{tpu_custom_call.1} parent=1 // pred_fallthru
      _
    // Predicated region
    $region22: #{tpu_custom_call.1} parent=1 // pred_check
      _
    $region23: #{tpu_custom_call.1} parent=1 // pred_check_branch
      %58 = sbr.rel (0) target = $region25
    $region24: #{tpu_custom_call.1} parent=1 // pred_region
      %60 = vsyncadd [#allocation9], 0
      %s61 = sshll.u32 %s5, 4
      %s62 = int_to_ptr.hbm [resolvable:$true] %s61
      %s63 = sshll.u32 [#allocation8], 4
      %s64 = int_to_ptr.vmem [resolvable:$true] %s63
      %69 = dma.hbm_to_vmem [thread:$0]  %s62, 2048, %s64, [#allocation9], 128, 128, 8
    $region25: #{tpu_custom_call.1} parent=1 // pred_fallthru
      _
    // Predicated region
    $region26: #{tpu_custom_call.1} parent=1 // pred_check
      _
    $region27: #{tpu_custom_call.1} parent=1 // pred_check_branch
      %71 = sbr.rel (0) target = $region29
    $region28: #{tpu_custom_call.1} parent=1 // pred_region
      _
    $region29: #{tpu_custom_call.1} parent=1 // pred_fallthru
      _
    // Predicated region
    $region30: #{tpu_custom_call.1} parent=1 // pred_check
      _
    $region31: #{tpu_custom_call.1} parent=1 // pred_check_branch
      %73 = sbr.rel (0) target = $region33
    $region32: #{tpu_custom_call.1} parent=1 // pred_region
      %75 = dma.done [#allocation3], 128
    $region33: #{tpu_custom_call.1} parent=1 // pred_fallthru
      _
    // Predicated region
    $region34: #{tpu_custom_call.1} parent=1 // pred_check
      _
    $region35: #{tpu_custom_call.1} parent=1 // pred_check_branch
      %77 = sbr.rel (0) target = $region37
    $region36: #{tpu_custom_call.1} parent=1 // pred_region
      %79 = dma.done [#allocation6], 256
    $region37: #{tpu_custom_call.1} parent=1 // pred_fallthru
      _
    // Predicated region
    $region38: #{tpu_custom_call.1} parent=1 // pred_check
      _
    $region39: #{tpu_custom_call.1} parent=1 // pred_check_branch
      %81 = sbr.rel (0) target = $region41
    $region40: #{tpu_custom_call.1} parent=1 // pred_region
      %83 = dma.done [#allocation6], 2048
    $region41: #{tpu_custom_call.1} parent=1 // pred_fallthru
      _
    // Predicated region
    $region42: #{tpu_custom_call.1} parent=1 // pred_check
      _
    $region43: #{tpu_custom_call.1} parent=1 // pred_check_branch
      %85 = sbr.rel (0) target = $region45
    $region44: #{tpu_custom_call.1} parent=1 // pred_region
      %87 = dma.done [#allocation9], 2048
    $region45: #{tpu_custom_call.1} parent=1 // pred_fallthru
      _
    %v88 = vld [vmem:[#allocation2] sm:$0xff]
    %v89 = vld [vmem:[#allocation5] sm:$0xff]
    %v90 = vld [vmem:[#allocation5 + $0x8] sm:$0xff]
    %v91 = vld [vmem:[%s2] sm:$0x1]
    %v93 = vperm.slane %v91, 0
    %vm95 = vcmask 130048
    %v97 = vsel %vm95, %v88, 0
    %99 = vmatpush.msra.mxu0 0.0
    %100 = vmatpush.msra.mxu0 0.0
    %101 = vmatpush.msra.mxu0 0.0
    %102 = vmatpush.msra.mxu0 0.0
    %103 = vmatpush.msra.mxu0 0.0
    %104 = vmatpush.msra.mxu0 0.0
    %105 = vmatpush.msra.mxu0 0.0
    %106 = vmatpush.msra.mxu0 0.0
    %107 = vmatpush.msra.mxu0 0.0
    %108 = vmatpush.msra.mxu0 0.0
    %109 = vmatpush.msra.mxu0 0.0
    %110 = vmatpush.msra.mxu0 0.0
    %111 = vmatpush.msra.mxu0 0.0
    %112 = vmatpush.msra.mxu0 0.0
    %113 = vmatpush.msra.mxu0 %v90
    %114 = vmatpush.msra.mxu0 %v89
    %115 = vmatmul.f32.gmra.mxu0 %v97
    %v116 = vpop.f32.mrf.mxu0
    %v117 = vadd.f32 %v93, %v116
    %118 = vdwg.mxu0
    %v119 = vmax.f32 %v117, 0.0
    %v120 = vld [vmem:[#allocation7] sm:$0xff]
    %v121 = vld [vmem:[#allocation7 + $0x8] sm:$0xff]
    %v122 = vld [vmem:[#allocation7 + $0x10] sm:$0xff]
    %v123 = vld [vmem:[#allocation7 + $0x18] sm:$0xff]
    %v124 = vld [vmem:[#allocation7 + $0x20] sm:$0xff]
    %v125 = vld [vmem:[#allocation7 + $0x28] sm:$0xff]
    %v126 = vld [vmem:[#allocation7 + $0x30] sm:$0xff]
    %v127 = vld [vmem:[#allocation7 + $0x38] sm:$0xff]
    %v128 = vld [vmem:[#allocation7 + $0x40] sm:$0xff]
    %v129 = vld [vmem:[#allocation7 + $0x48] sm:$0xff]
    %v130 = vld [vmem:[#allocation7 + $0x50] sm:$0xff]
    %v131 = vld [vmem:[#allocation7 + $0x58] sm:$0xff]
    %v132 = vld [vmem:[#allocation7 + $0x60] sm:$0xff]
    %v133 = vld [vmem:[#allocation7 + $0x68] sm:$0xff]
    %v134 = vld [vmem:[#allocation7 + $0x70] sm:$0xff]
    %v135 = vld [vmem:[#allocation7 + $0x78] sm:$0xff]
    %v136 = vld [vmem:[%s4] sm:$0x1]
    %v138 = vperm.slane %v136, 0
    %140 = vmatpush.msra.mxu0 %v135
    %141 = vmatpush.msra.mxu0 %v134
    %142 = vmatpush.msra.mxu0 %v133
    %143 = vmatpush.msra.mxu0 %v132
    %144 = vmatpush.msra.mxu0 %v131
    %145 = vmatpush.msra.mxu0 %v130
    %146 = vmatpush.msra.mxu0 %v129
    %147 = vmatpush.msra.mxu0 %v128
    %148 = vmatpush.msra.mxu0 %v127
    %149 = vmatpush.msra.mxu0 %v126
    %150 = vmatpush.msra.mxu0 %v125
    %151 = vmatpush.msra.mxu0 %v124
    %152 = vmatpush.msra.mxu0 %v123
    %153 = vmatpush.msra.mxu0 %v122
    %154 = vmatpush.msra.mxu0 %v121
    %155 = vmatpush.msra.mxu0 %v120
    %156 = vmatmul.f32.gmra.mxu0 %v119
    %v157 = vpop.f32.mrf.mxu0
    %v158 = vadd.f32 %v138, %v157
    %159 = vdwg.mxu0
    %v160 = vmax.f32 %v158, 0.0
    %v161 = vld [vmem:[#allocation8] sm:$0xff]
    %v162 = vld [vmem:[#allocation8 + $0x8] sm:$0xff]
    %v163 = vld [vmem:[#allocation8 + $0x10] sm:$0xff]
    %v164 = vld [vmem:[#allocation8 + $0x18] sm:$0xff]
    %v165 = vld [vmem:[#allocation8 + $0x20] sm:$0xff]
    %v166 = vld [vmem:[#allocation8 + $0x28] sm:$0xff]
    %v167 = vld [vmem:[#allocation8 + $0x30] sm:$0xff]
    %v168 = vld [vmem:[#allocation8 + $0x38] sm:$0xff]
    %v169 = vld [vmem:[#allocation8 + $0x40] sm:$0xff]
    %v170 = vld [vmem:[#allocation8 + $0x48] sm:$0xff]
    %v171 = vld [vmem:[#allocation8 + $0x50] sm:$0xff]
    %v172 = vld [vmem:[#allocation8 + $0x58] sm:$0xff]
    %v173 = vld [vmem:[#allocation8 + $0x60] sm:$0xff]
    %v174 = vld [vmem:[#allocation8 + $0x68] sm:$0xff]
    %v175 = vld [vmem:[#allocation8 + $0x70] sm:$0xff]
    %v176 = vld [vmem:[#allocation8 + $0x78] sm:$0xff]
    %v177 = vld [vmem:[%s6] sm:$0x1]
    %v179 = vperm.slane %v177, 0
    %181 = vmatpush.msra.mxu0 %v176
    %182 = vmatpush.msra.mxu0 %v175
    %183 = vmatpush.msra.mxu0 %v174
    %184 = vmatpush.msra.mxu0 %v173
    %185 = vmatpush.msra.mxu0 %v172
    %186 = vmatpush.msra.mxu0 %v171
    %187 = vmatpush.msra.mxu0 %v170
    %188 = vmatpush.msra.mxu0 %v169
    %189 = vmatpush.msra.mxu0 %v168
    %190 = vmatpush.msra.mxu0 %v167
    %191 = vmatpush.msra.mxu0 %v166
    %192 = vmatpush.msra.mxu0 %v165
    %193 = vmatpush.msra.mxu0 %v164
    %194 = vmatpush.msra.mxu0 %v163
    %195 = vmatpush.msra.mxu0 %v162
    %196 = vmatpush.msra.mxu0 %v161
    %197 = vmatmul.f32.gmra.mxu0 %v160
    %v198 = vpop.f32.mrf.mxu0
    %v199 = vadd.f32 %v179, %v198
    %200 = vdwg.mxu0
    %v201 = vtanh.pop %v199
    %202 = vst [vmem:[#allocation10] sm:$0xff] %v201
    // Predicated region
    $region46: #{tpu_custom_call.1} parent=1 // pred_check
      _
    $region47: #{tpu_custom_call.1} parent=1 // pred_check_branch
      %204 = sbr.rel (0) target = $region49
    $region48: #{tpu_custom_call.1} parent=1 // pred_region
      %206 = vsyncadd [#allocation4], 0
      %s208 = sshll.u32 [#allocation10], 4
      %s209 = int_to_ptr.vmem [resolvable:$true] %s208
      %s210 = sshll.u32 %s7, 4
      %s211 = int_to_ptr.hbm [resolvable:$true] %s210
      %213 = dma.vmem_to_hbm [thread:$0]  %s209, 128, %s211, [#allocation4]
    $region49: #{tpu_custom_call.1} parent=1 // pred_fallthru
      _
    // Predicated region
    $region50: #{tpu_custom_call.1} parent=1 // pred_check
      _
    $region51: #{tpu_custom_call.1} parent=1 // pred_check_branch
      %215 = sbr.rel (0) target = $region53
    $region52: #{tpu_custom_call.1} parent=1 // pred_region
      %217 = dma.done [#allocation4], 128
    $region53: #{tpu_custom_call.1} parent=1 // pred_fallthru
      _
    %218 = vsyncpa [#allocation3], 1
    %219 = vsyncpa [#allocation6], 1
    %220 = vsyncpa [#allocation9], 1
    %221 = vsyncpa [#allocation4], 1

// kernel: tpu_custom_call.1
$region0: #{tpu_custom_call.1}
  #allocation0 [shape = 'u32[]', space=smem, size = 0x4, offset = 0x4, fixed_abs, tag = 'smem constant byte address 0x4 - core index']
  #allocation1 [shape = 'u32[72,128]{1,0:T(1,128)}', space=vmem, size = 0x9000, scoped, tag = 'internal scratch']
  %s0 = inlined_call_operand.hbm [shape: f32[8,16], index: 0, kind: input, shape index: {}]
  %s1 = inlined_call_operand.hbm [shape: f32[16,128], index: 1, kind: input, shape index: {}]
  %s2 = inlined_call_operand.vmem [shape: f32[1,128], index: 2, kind: input, shape index: {}]
  %s3 = inlined_call_operand.hbm [shape: f32[128,128], index: 3, kind: input, shape index: {}]
  %s4 = inlined_call_operand.vmem [shape: f32[1,128], index: 4, kind: input, shape index: {}]
  %s5 = inlined_call_operand.hbm [shape: f32[128,128], index: 5, kind: input, shape index: {}]
  %s6 = inlined_call_operand.vmem [shape: f32[1,128], index: 6, kind: input, shape index: {}]
  %s7 = inlined_call_operand.hbm [shape: f32[8,128], index: 7, kind: output, shape index: {}]
  %s8 = sld [smem:[#allocation0]]
  $region54: #{tpu_custom_call.1} parent=0
    _
  %s10 = ssub.s32 1, %s8
  %s11 = scalar_select 0, %s10, %s8
  $region1: #{tpu_custom_call.1} parent=0
    #allocation2 [shape = 'u8[4096]{0}', space=vmem, size = 0x1000, scoped, tag = 'input window, operand 0, single buffered']
    #allocation3 [shape = 's32[1]{0}', space=sflag, size = 0x4, scoped, tag = 'scoped memory for tpu_custom_call.1']
    #allocation4 [shape = 's32[1]{0}', space=sflag, size = 0x4, scoped, tag = 'scoped memory for tpu_custom_call.1']
    #allocation5 [shape = 'u8[8192]{0}', space=vmem, size = 0x2000, scoped, tag = 'input window, operand 1, single buffered']
    #allocation6 [shape = 's32[1]{0}', space=sflag, size = 0x4, scoped, tag = 'scoped memory for tpu_custom_call.1']
    #allocation7 [shape = 'u8[65536]{0}', space=vmem, size = 0x10000, scoped, tag = 'input window, operand 3, single buffered']
    #allocation8 [shape = 'u8[65536]{0}', space=vmem, size = 0x10000, scoped, tag = 'input window, operand 5, single buffered']
    #allocation9 [shape = 's32[1]{0}', space=sflag, size = 0x4, scoped, tag = 'scoped memory for tpu_custom_call.1']
    #allocation10 [shape = 'u8[4096]{0}', space=vmem, size = 0x1000, scoped, tag = 'output window, operand 0, single buffered']
    %12 = vsyncpa [#allocation3], 0
    %13 = vsyncpa [#allocation6], 0
    %14 = vsyncpa [#allocation9], 0
    %15 = vsyncpa [#allocation4], 0
    // Predicated region
    $region2: #{tpu_custom_call.1} parent=1 // pred_check
      _
    $region3: #{tpu_custom_call.1} parent=1 // pred_check_branch
      %17 = sbr.rel (0) target = $region5
    $region4: #{tpu_custom_call.1} parent=1 // pred_region
      %19 = vsyncadd [#allocation3], 0
      %s21 = sshll.u32 %s0, 4
      %s22 = int_to_ptr.hbm [resolvable:$true] %s21
      %s23 = sshll.u32 [#allocation2], 4
      %s24 = int_to_ptr.vmem [resolvable:$true] %s23
      %26 = dma.hbm_to_vmem [thread:$0]  %s22, 128, %s24, [#allocation3]
    $region5: #{tpu_custom_call.1} parent=1 // pred_fallthru
      _
    // Predicated region
    $region6: #{tpu_custom_call.1} parent=1 // pred_check
      _
    $region7: #{tpu_custom_call.1} parent=1 // pred_check_branch
      %28 = sbr.rel (0) target = $region9
    $region8: #{tpu_custom_call.1} parent=1 // pred_region
      %30 = vsyncadd [#allocation6], 0
      %s31 = sshll.u32 %s1, 4
      %s32 = int_to_ptr.hbm [resolvable:$true] %s31
      %s33 = sshll.u32 [#allocation5], 4
      %s34 = int_to_ptr.vmem [resolvable:$true] %s33
      %39 = dma.hbm_to_vmem [thread:$0]  %s32, 256, %s34, [#allocation6], 128, 128, 8
    $region9: #{tpu_custom_call.1} parent=1 // pred_fallthru
      _
    // Predicated region
    $region10: #{tpu_custom_call.1} parent=1 // pred_check
      _
    $region11: #{tpu_custom_call.1} parent=1 // pred_check_branch
      %41 = sbr.rel (0) target = $region13
    $region12: #{tpu_custom_call.1} parent=1 // pred_region
      _
    $region13: #{tpu_custom_call.1} parent=1 // pred_fallthru
      _
    // Predicated region
    $region14: #{tpu_custom_call.1} parent=1 // pred_check
      _
    $region15: #{tpu_custom_call.1} parent=1 // pred_check_branch
      %43 = sbr.rel (0) target = $region17
    $region16: #{tpu_custom_call.1} parent=1 // pred_region
      %45 = vsyncadd [#allocation6], 0
      %s46 = sshll.u32 %s3, 4
      %s47 = int_to_ptr.hbm [resolvable:$true] %s46
      %s48 = sshll.u32 [#allocation7], 4
      %s49 = int_to_ptr.vmem [resolvable:$true] %s48
      %54 = dma.hbm_to_vmem [thread:$0]  %s47, 2048, %s49, [#allocation6], 128, 128, 8
    $region17: #{tpu_custom_call.1} parent=1 // pred_fallthru
      _
    // Predicated region
    $region18: #{tpu_custom_call.1} parent=1 // pred_check
      _
    $region19: #{tpu_custom_call.1} parent=1 // pred_check_branch
      %56 = sbr.rel (0) target = $region21
    $region20: #{tpu_custom_call.1} parent=1 // pred_region
      _
    $region21: #{tpu_custom_call.1} parent=1 // pred_fallthru
      _
    // Predicated region
    $region22: #{tpu_custom_call.1} parent=1 // pred_check
      _
    $region23: #{tpu_custom_call.1} parent=1 // pred_check_branch
      %58 = sbr.rel (0) target = $region25
    $region24: #{tpu_custom_call.1} parent=1 // pred_region
      %60 = vsyncadd [#allocation9], 0
      %s61 = sshll.u32 %s5, 4
      %s62 = int_to_ptr.hbm [resolvable:$true] %s61
      %s63 = sshll.u32 [#allocation8], 4
      %s64 = int_to_ptr.vmem [resolvable:$true] %s63
      %69 = dma.hbm_to_vmem [thread:$0]  %s62, 2048, %s64, [#allocation9], 128, 128, 8
    $region25: #{tpu_custom_call.1} parent=1 // pred_fallthru
      _
    // Predicated region
    $region26: #{tpu_custom_call.1} parent=1 // pred_check
      _
    $region27: #{tpu_custom_call.1} parent=1 // pred_check_branch
      %71 = sbr.rel (0) target = $region29
    $region28: #{tpu_custom_call.1} parent=1 // pred_region
      _
    $region29: #{tpu_custom_call.1} parent=1 // pred_fallthru
      _
    // Predicated region
    $region30: #{tpu_custom_call.1} parent=1 // pred_check
      _
    $region31: #{tpu_custom_call.1} parent=1 // pred_check_branch
      %73 = sbr.rel (0) target = $region33
    $region32: #{tpu_custom_call.1} parent=1 // pred_region
      %75 = dma.done [#allocation3], 128
    $region33: #{tpu_custom_call.1} parent=1 // pred_fallthru
      _
    // Predicated region
    $region34: #{tpu_custom_call.1} parent=1 // pred_check
      _
    $region35: #{tpu_custom_call.1} parent=1 // pred_check_branch
      %77 = sbr.rel (0) target = $region37
    $region36: #{tpu_custom_call.1} parent=1 // pred_region
      %79 = dma.done [#allocation6], 256
    $region37: #{tpu_custom_call.1} parent=1 // pred_fallthru
      _
    // Predicated region
    $region38: #{tpu_custom_call.1} parent=1 // pred_check
      _
    $region39: #{tpu_custom_call.1} parent=1 // pred_check_branch
      %81 = sbr.rel (0) target = $region41
    $region40: #{tpu_custom_call.1} parent=1 // pred_region
      %83 = dma.done [#allocation6], 2048
    $region41: #{tpu_custom_call.1} parent=1 // pred_fallthru
      _
    // Predicated region
    $region42: #{tpu_custom_call.1} parent=1 // pred_check
      _
    $region43: #{tpu_custom_call.1} parent=1 // pred_check_branch
      %85 = sbr.rel (0) target = $region45
    $region44: #{tpu_custom_call.1} parent=1 // pred_region
      %87 = dma.done [#allocation9], 2048
    $region45: #{tpu_custom_call.1} parent=1 // pred_fallthru
      _
    %v88 = vld [vmem:[#allocation2] sm:$0xff]
    %v89 = vld [vmem:[#allocation5] sm:$0xff]
    %v90 = vld [vmem:[#allocation5 + $0x8] sm:$0xff]
    %v91 = vld [vmem:[%s2] sm:$0x1]
    %v93 = vperm.slane %v91, 0
    %vm95 = vcmask 130048
    %v97 = vsel %vm95, %v88, 0
    %99 = vmatpush.msra.mxu0 0.0
    %100 = vmatpush.msra.mxu0 0.0
    %101 = vmatpush.msra.mxu0 0.0
    %102 = vmatpush.msra.mxu0 0.0
    %103 = vmatpush.msra.mxu0 0.0
    %104 = vmatpush.msra.mxu0 0.0
    %105 = vmatpush.msra.mxu0 0.0
    %106 = vmatpush.msra.mxu0 0.0
    %107 = vmatpush.msra.mxu0 0.0
    %108 = vmatpush.msra.mxu0 0.0
    %109 = vmatpush.msra.mxu0 0.0
    %110 = vmatpush.msra.mxu0 0.0
    %111 = vmatpush.msra.mxu0 0.0
    %112 = vmatpush.msra.mxu0 0.0
    %113 = vmatpush.msra.mxu0 %v90
    %114 = vmatpush.msra.mxu0 %v89
    %115 = vmatmul.f32.gmra.mxu0 %v97
    %v116 = vpop.f32.mrf.mxu0
    %v117 = vadd.f32 %v93, %v116
    %118 = vdwg.mxu0
    %v119 = vmax.f32 %v117, 0.0
    %v120 = vld [vmem:[#allocation7] sm:$0xff]
    %v121 = vld [vmem:[#allocation7 + $0x8] sm:$0xff]
    %v122 = vld [vmem:[#allocation7 + $0x10] sm:$0xff]
    %v123 = vld [vmem:[#allocation7 + $0x18] sm:$0xff]
    %v124 = vld [vmem:[#allocation7 + $0x20] sm:$0xff]
    %v125 = vld [vmem:[#allocation7 + $0x28] sm:$0xff]
    %v126 = vld [vmem:[#allocation7 + $0x30] sm:$0xff]
    %v127 = vld [vmem:[#allocation7 + $0x38] sm:$0xff]
    %v128 = vld [vmem:[#allocation7 + $0x40] sm:$0xff]
    %v129 = vld [vmem:[#allocation7 + $0x48] sm:$0xff]
    %v130 = vld [vmem:[#allocation7 + $0x50] sm:$0xff]
    %v131 = vld [vmem:[#allocation7 + $0x58] sm:$0xff]
    %v132 = vld [vmem:[#allocation7 + $0x60] sm:$0xff]
    %v133 = vld [vmem:[#allocation7 + $0x68] sm:$0xff]
    %v134 = vld [vmem:[#allocation7 + $0x70] sm:$0xff]
    %v135 = vld [vmem:[#allocation7 + $0x78] sm:$0xff]
    %v136 = vld [vmem:[%s4] sm:$0x1]
    %v138 = vperm.slane %v136, 0
    %140 = vmatpush.msra.mxu0 %v135
    %141 = vmatpush.msra.mxu0 %v134
    %142 = vmatpush.msra.mxu0 %v133
    %143 = vmatpush.msra.mxu0 %v132
    %144 = vmatpush.msra.mxu0 %v131
    %145 = vmatpush.msra.mxu0 %v130
    %146 = vmatpush.msra.mxu0 %v129
    %147 = vmatpush.msra.mxu0 %v128
    %148 = vmatpush.msra.mxu0 %v127
    %149 = vmatpush.msra.mxu0 %v126
    %150 = vmatpush.msra.mxu0 %v125
    %151 = vmatpush.msra.mxu0 %v124
    %152 = vmatpush.msra.mxu0 %v123
    %153 = vmatpush.msra.mxu0 %v122
    %154 = vmatpush.msra.mxu0 %v121
    %155 = vmatpush.msra.mxu0 %v120
    %156 = vmatmul.f32.gmra.mxu0 %v119
    %v157 = vpop.f32.mrf.mxu0
    %v158 = vadd.f32 %v138, %v157
    %159 = vdwg.mxu0
    %v160 = vmax.f32 %v158, 0.0
    %v161 = vld [vmem:[#allocation8] sm:$0xff]
    %v162 = vld [vmem:[#allocation8 + $0x8] sm:$0xff]
    %v163 = vld [vmem:[#allocation8 + $0x10] sm:$0xff]
    %v164 = vld [vmem:[#allocation8 + $0x18] sm:$0xff]
    %v165 = vld [vmem:[#allocation8 + $0x20] sm:$0xff]
    %v166 = vld [vmem:[#allocation8 + $0x28] sm:$0xff]
    %v167 = vld [vmem:[#allocation8 + $0x30] sm:$0xff]
    %v168 = vld [vmem:[#allocation8 + $0x38] sm:$0xff]
    %v169 = vld [vmem:[#allocation8 + $0x40] sm:$0xff]
    %v170 = vld [vmem:[#allocation8 + $0x48] sm:$0xff]
    %v171 = vld [vmem:[#allocation8 + $0x50] sm:$0xff]
    %v172 = vld [vmem:[#allocation8 + $0x58] sm:$0xff]
    %v173 = vld [vmem:[#allocation8 + $0x60] sm:$0xff]
    %v174 = vld [vmem:[#allocation8 + $0x68] sm:$0xff]
    %v175 = vld [vmem:[#allocation8 + $0x70] sm:$0xff]
    %v176 = vld [vmem:[#allocation8 + $0x78] sm:$0xff]
    %v177 = vld [vmem:[%s6] sm:$0x1]
    %v179 = vperm.slane %v177, 0
    %181 = vmatpush.msra.mxu0 %v176
    %182 = vmatpush.msra.mxu0 %v175
    %183 = vmatpush.msra.mxu0 %v174
    %184 = vmatpush.msra.mxu0 %v173
    %185 = vmatpush.msra.mxu0 %v172
    %186 = vmatpush.msra.mxu0 %v171
    %187 = vmatpush.msra.mxu0 %v170
    %188 = vmatpush.msra.mxu0 %v169
    %189 = vmatpush.msra.mxu0 %v168
    %190 = vmatpush.msra.mxu0 %v167
    %191 = vmatpush.msra.mxu0 %v166
    %192 = vmatpush.msra.mxu0 %v165
    %193 = vmatpush.msra.mxu0 %v164
    %194 = vmatpush.msra.mxu0 %v163
    %195 = vmatpush.msra.mxu0 %v162
    %196 = vmatpush.msra.mxu0 %v161
    %197 = vmatmul.f32.gmra.mxu0 %v160
    %v198 = vpop.f32.mrf.mxu0
    %v199 = vadd.f32 %v179, %v198
    %200 = vdwg.mxu0
    %v201 = vtanh.pop %v199
    %202 = vst [vmem:[#allocation10] sm:$0xff] %v201
    // Predicated region
    $region46: #{tpu_custom_call.1} parent=1 // pred_check
      _
    $region47: #{tpu_custom_call.1} parent=1 // pred_check_branch
      %204 = sbr.rel (0) target = $region49
    $region48: #{tpu_custom_call.1} parent=1 // pred_region
      %206 = vsyncadd [#allocation4], 0
      %s208 = sshll.u32 [#allocation10], 4
      %s209 = int_to_ptr.vmem [resolvable:$true] %s208
      %s210 = sshll.u32 %s7, 4
      %s211 = int_to_ptr.hbm [resolvable:$true] %s210
      %213 = dma.vmem_to_hbm [thread:$0]  %s209, 128, %s211, [#allocation4]
    $region49: #{tpu_custom_call.1} parent=1 // pred_fallthru
      _
    // Predicated region
    $region50: #{tpu_custom_call.1} parent=1 // pred_check
      _
    $region51: #{tpu_custom_call.1} parent=1 // pred_check_branch
      %215 = sbr.rel (0) target = $region53
    $region52: #{tpu_custom_call.1} parent=1 // pred_region
      %217 = dma.done [#allocation4], 128
    $region53: #{tpu_custom_call.1} parent=1 // pred_fallthru
      _
    %218 = vsyncpa [#allocation3], 1
    %219 = vsyncpa [#allocation6], 1
    %220 = vsyncpa [#allocation9], 1
    %221 = vsyncpa [#allocation4], 1

</llo_original>
